<compile_context>
chip_gen: v7x
topology: tpu7x:2x2x1
jax: 0.10.0
libtpu: 0.0.40
codegen_flags: <defaults>
</compile_context>

<pallas_src>
import math
import functools

import jax
import jax.numpy as jnp
from jax.experimental import pallas as pl
from jax.experimental.pallas import tpu as pltpu


# ----------------------------------------------------------------------------
# Pallas kernel: one fused (3H,K)@(K,TT) matmul + sigmoid-gated blend per tile
# ----------------------------------------------------------------------------
def _bpf_encoder_kernel(
    p_ref,      # (1, K, TT)  bf16  framed waveform patches (time on lanes)
    w_ref,      # (3H, K)     bf16  fused weights  [W_x1 ; W_x2 ; W_z]
    b_ref,      # (3H, 1)     f32   fused biases   [b1  ; b2  ; b_z]
    out_ref,    # (1, H, TT)  out_dtype  fusion output tile (NCL layout)
):
    H = out_ref.shape[1]

    # Single MXU push per tile, f32 accumulation.  Result is already (3H, TT)
    # with the large TT axis on lanes -> no transpose before the store.
    y = jnp.dot(w_ref[...], p_ref[0], preferred_element_type=jnp.float32)
    y = y + b_ref[...]                       # (3H, 1) broadcast over lanes

    x1 = y[:H]                               # sublane slices (H multiple of 8)
    x2 = y[H:2 * H]
    z = y[2 * H:]

    mask = jax.nn.sigmoid(z)                 # EUP
    fused = x2 + mask * (x1 - x2)            # 3 VPU ops (vs 4 naive blend)

    out_ref[0] = fused.astype(out_ref.dtype)


def bpf_encoder_forward(x, params, *, kernel_size, stride, time_tile=512,
                        out_dtype=jnp.float32):
    """x: (N, L) float32 waveform. Returns fusion: (N, hid_dim, T) in out_dtype."""
    w_stft, w_conv, w1, b1, w2, b2, wm, bm = params
    K = kernel_size
    N, L = x.shape
    T = (L - K) // stride + 1
    H = w1.shape[0]
    TT = time_tile
    assert TT % 128 == 0, "time_tile must be a multiple of 128 (lane dim)"

    # ---- host-side algebraic fusion of the purely-linear chain (tiny, f32) --
    Wx1 = w1 @ w_stft                                   # (H, K)
    Wx2 = w2 @ w_conv                                   # (H, K)
    wm1, wm2 = wm[:, :H], wm[:, H:]                     # mask conv split at concat
    Wz = wm1 @ Wx1 + wm2 @ Wx2                          # (H, K)
    bz = wm1 @ b1 + wm2 @ b2 + bm                       # (H,)
    w_cat = jnp.concatenate([Wx1, Wx2, Wz], axis=0).astype(jnp.bfloat16)   # (3H, K)
    b_cat = (jnp.concatenate([b1, b2, bz], axis=0)
             .reshape(3 * H, 1).astype(jnp.float32))                       # (3H, 1)

    # ---- framing (im2col) directly in (N, K, T) bf16 layout: K on sublanes,
    #      T on lanes, so the kernel's patch tiles are lane-dense. -----------
    idx = jnp.arange(K)[:, None] + jnp.arange(T)[None, :] * stride         # (K, T)
    patches = x[:, idx].astype(jnp.bfloat16)                               # (N, K, T)

    n_tiles = pl.cdiv(T, TT)
    T_pad = n_tiles * TT
    if T_pad != T:
        # Pad the (small) input only; the output stays exactly (N, H, T) and the
        # boundary block's out-of-range columns are clipped by Pallas on store.
        patches = jnp.pad(patches, ((0, 0), (0, 0), (0, T_pad - T)))

    out_itemsize = jnp.dtype(out_dtype).itemsize
    vmem_est = (2 * K * TT * 2                  # patches, double-buffered, bf16
                + 2 * 3 * H * K * 2             # fused weights
                + 2 * 3 * H * 4                 # fused bias
                + 2 * H * TT * out_itemsize     # output tile, double-buffered
                + 4 * 3 * H * TT * 4)           # f32 intermediates headroom
    vmem_limit = int(min(max(2 * vmem_est, 8 << 20), 32 << 20))

    out = pl.pallas_call(
        _bpf_encoder_kernel,
        out_shape=jax.ShapeDtypeStruct((N, H, T), out_dtype),  # exact T: no post-slice
        grid=(N, n_tiles),
        in_specs=[
            pl.BlockSpec((1, K, TT), lambda n, t: (n, 0, t)),   # patches (tiled)
            pl.BlockSpec((3 * H, K), lambda n, t: (0, 0)),      # fused weights
            pl.BlockSpec((3 * H, 1), lambda n, t: (0, 0)),      # fused biases
        ],
        out_specs=pl.BlockSpec((1, H, TT), lambda n, t: (n, 0, t)),
        compiler_params=pltpu.CompilerParams(
            dimension_semantics=("parallel", "parallel"),
            vmem_limit_bytes=vmem_limit),
    )(patches, w_cat, b_cat)
    return out


# ----------------------------------------------------------------------------
# Deterministic parameter construction (raw, unfused — mirrors the PyTorch module)
# ----------------------------------------------------------------------------
def make_params(key, *, stft_dim, conv_dim, hid_dim, kernel_size):
    K = kernel_size

    # Fixed DFT filterbank standing in for the STFT module: cos + sin kernels.
    nf = stft_dim // 2
    n = jnp.arange(K, dtype=jnp.float32)
    f = jnp.arange(nf, dtype=jnp.float32)
    ang = 2.0 * math.pi * f[:, None] * n[None, :] / float(K)
    w_stft = jnp.concatenate([jnp.cos(ang), jnp.sin(ang)], axis=0)   # (stft_dim, K)

    ks = jax.random.split(key, 7)

    def uniform(k, shape, fan_in):
        bound = 1.0 / math.sqrt(fan_in)
        return jax.random.uniform(k, shape, jnp.float32, -bound, bound)

    w_conv = uniform(ks[0], (conv_dim, K), K)                  # conv1d, bias=False
    w1 = uniform(ks[1], (hid_dim, stft_dim), stft_dim)         # proj1
    b1 = uniform(ks[2], (hid_dim,), stft_dim)
    w2 = uniform(ks[3], (hid_dim, conv_dim), conv_dim)         # proj2
    b2 = uniform(ks[4], (hid_dim,), conv_dim)
    wm = uniform(ks[5], (hid_dim, 2 * hid_dim), 2 * hid_dim)   # mask 1x1 conv
    bm = uniform(ks[6], (hid_dim,), 2 * hid_dim)
    return (w_stft, w_conv, w1, b1, w2, b2, wm, bm)


# ----------------------------------------------------------------------------
# Pure-JAX f32 reference (mirrors the PyTorch forward, unfused) for correctness
# ----------------------------------------------------------------------------
def reference_forward(x, params, *, kernel_size, stride):
    w_stft, w_conv, w1, b1, w2, b2, wm, bm = params
    K = kernel_size
    N, L = x.shape
    T = (L - K) // stride + 1
    idx = jnp.arange(K)[:, None] + jnp.arange(T)[None, :] * stride
    p = x[:, idx]                                                  # (N, K, T)
    stft = jnp.einsum('fk,nkt->nft', w_stft, p)                    # (N, stft, T)
    conv = jnp.einsum('ck,nkt->nct', w_conv, p)                    # (N, conv, T)
    x1 = jnp.einsum('hf,nft->nht', w1, stft) + b1[None, :, None]
    x2 = jnp.einsum('hc,nct->nht', w2, conv) + b2[None, :, None]
    z = (jnp.einsum('hg,ngt->nht', wm, jnp.concatenate([x1, x2], axis=1))
         + bm[None, :, None])
    mask = jax.nn.sigmoid(z)
    return mask * x1 + (1.0 - mask) * x2                           # (N, H, T)


# ----------------------------------------------------------------------------
if __name__ == "__main__":
    # Small, shape-consistent test configuration; T = (1040-16)//8 + 1 = 129
    # so the time axis spans multiple tiles and exercises the clipped boundary.
    batch, L = 2, 1040
    stft_dim, conv_dim, hid_dim = 16, 16, 8
    kernel_size, stride = 16, 8

    key = jax.random.PRNGKey(0)
    kx, kp = jax.random.split(key)
    x = jax.random.normal(kx, (batch, L), dtype=jnp.float32)       # N x L waveform

    params = make_params(kp, stft_dim=stft_dim, conv_dim=conv_dim,
                         hid_dim=hid_dim, kernel_size=kernel_size)

    T = (L - kernel_size) // stride + 1
    ref = reference_forward(x, params, kernel_size=kernel_size, stride=stride)

    # f32 output, 128-wide tile -> multi-tile grid + partial boundary block.
    run_f32 = jax.jit(functools.partial(
        bpf_encoder_forward, kernel_size=kernel_size, stride=stride,
        time_tile=128, out_dtype=jnp.float32))
    out = jax.block_until_ready(run_f32(x, params))
    assert out.shape == ref.shape == (batch, hid_dim, T)
    # bf16 matmul inputs + fused (reordered) summation vs pure-f32 reference.
    assert jnp.allclose(out, ref, atol=1e-1, rtol=5e-2), (
        f"f32 max abs err {float(jnp.max(jnp.abs(out - ref)))}")
    assert float(jnp.mean(jnp.abs(out - ref))) < 2e-2

    # bf16 output (halves the dominant output HBM traffic), default 512 tile.
    run_bf16 = jax.jit(functools.partial(
        bpf_encoder_forward, kernel_size=kernel_size, stride=stride,
        out_dtype=jnp.bfloat16))
    out16 = jax.block_until_ready(run_bf16(x, params)).astype(jnp.float32)
    assert out16.shape == ref.shape
    assert jnp.allclose(out16, ref, atol=1.5e-1, rtol=1e-1), (
        f"bf16 max abs err {float(jnp.max(jnp.abs(out16 - ref)))}")

    print("KERNEL_OK")
</pallas_src>

<mosaic_0001>
module attributes {stable_mosaic.version = 11 : i64} {
  func.func @_bpf_encoder_kernel(%arg0: i32, %arg1: i32, %arg2: memref<1x16x128xbf16, #tpu.memory_space<vmem>>, %arg3: memref<24x16xbf16, #tpu.memory_space<vmem>>, %arg4: memref<24x1xf32, #tpu.memory_space<vmem>>, %arg5: memref<1x8x128xf32, #tpu.memory_space<vmem>>) attributes {dimension_semantics = [#tpu.dimension_semantics<parallel>, #tpu.dimension_semantics<parallel>], iteration_bounds = array<i64: 2, 2>, scalar_prefetch = 0 : i64, scratch_operands = 0 : i64, tpu.core_type = #tpu.core_type<tc>, window_params = [{transform_indices = @transform_0, window_bounds = array<i64: 1, 16, 128>}, {pipeline_mode = #tpu.pipeline_mode<synchronous>, transform_indices = @transform_1, window_bounds = array<i64: 24, 16>}, {pipeline_mode = #tpu.pipeline_mode<synchronous>, transform_indices = @transform_2, window_bounds = array<i64: 24, 1>}, {transform_indices = @transform_3, window_bounds = array<i64: 1, 8, 128>}]} {
    %c0 = arith.constant 0 : index
    %c0_0 = arith.constant 0 : index
    %0 = vector.load %arg3[%c0, %c0_0] : memref<24x16xbf16, #tpu.memory_space<vmem>>, vector<24x16xbf16>
    %c0_1 = arith.constant 0 : index
    %c0_2 = arith.constant 0 : index
    %c0_3 = arith.constant 0 : index
    %1 = vector.load %arg2[%c0_1, %c0_2, %c0_3] : memref<1x16x128xbf16, #tpu.memory_space<vmem>>, vector<1x16x128xbf16>
    %2 = vector.shape_cast %1 : vector<1x16x128xbf16> to vector<16x128xbf16>
    %cst = arith.constant dense<0.000000e+00> : vector<24x128xf32>
    %3 = tpu.matmul %0, %2, %cst {dimension_numbers = #tpu.dot_dimension_numbers<[1], [0], [0], [1], [0, 0, 1, 1], [], []>} : vector<24x16xbf16>, vector<16x128xbf16>, vector<24x128xf32> -> vector<24x128xf32>
    %c0_4 = arith.constant 0 : index
    %c0_5 = arith.constant 0 : index
    %4 = vector.load %arg4[%c0_4, %c0_5] : memref<24x1xf32, #tpu.memory_space<vmem>>, vector<24x1xf32>
    %5 = vector.broadcast %4 : vector<24x1xf32> to vector<24x128xf32>
    %6 = arith.addf %3, %5 : vector<24x128xf32>
    %7 = vector.extract_strided_slice %6 {offsets = [0, 0], sizes = [8, 128], strides = [1, 1]} : vector<24x128xf32> to vector<8x128xf32>
    %8 = vector.extract_strided_slice %6 {offsets = [8, 0], sizes = [8, 128], strides = [1, 1]} : vector<24x128xf32> to vector<8x128xf32>
    %9 = vector.extract_strided_slice %6 {offsets = [16, 0], sizes = [8, 128], strides = [1, 1]} : vector<24x128xf32> to vector<8x128xf32>
    %10 = arith.negf %9 : vector<8x128xf32>
    %11 = math.exp %10 : vector<8x128xf32>
    %cst_6 = arith.constant 1.000000e+00 : f32
    %12 = vector.broadcast %cst_6 : f32 to vector<8x128xf32>
    %13 = arith.addf %12, %11 : vector<8x128xf32>
    %14 = arith.divf %12, %13 : vector<8x128xf32>
    %15 = arith.subf %7, %8 : vector<8x128xf32>
    %16 = arith.mulf %14, %15 : vector<8x128xf32>
    %17 = arith.addf %8, %16 : vector<8x128xf32>
    %c0_7 = arith.constant 0 : index
    %c0_8 = arith.constant 0 : index
    %c0_9 = arith.constant 0 : index
    %18 = vector.load %arg5[%c0_7, %c0_8, %c0_9] : memref<1x8x128xf32, #tpu.memory_space<vmem>>, vector<1x8x128xf32>
    %19 = vector.shape_cast %18 : vector<1x8x128xf32> to vector<8x128xf32>
    %20 = vector.shape_cast %17 : vector<8x128xf32> to vector<1x8x128xf32>
    tpu.vector_store %arg5[%c0_7, %c0_8, %c0_9], %20 {strides = array<i32>} : memref<1x8x128xf32, #tpu.memory_space<vmem>>, vector<1x8x128xf32>,
    return
  }
  func.func @transform_0(%arg0: i32, %arg1: i32) -> (i32, i32, i32) {
    %c0_i32 = arith.constant 0 : i32
    %c0_i32_0 = arith.constant 0 : i32
    return %arg0, %c0_i32, %arg1 : i32, i32, i32
  }
  func.func @transform_1(%arg0: i32, %arg1: i32) -> (i32, i32) {
    %c0_i32 = arith.constant 0 : i32
    %c0_i32_0 = arith.constant 0 : i32
    %c0_i32_1 = arith.constant 0 : i32
    return %c0_i32, %c0_i32_0 : i32, i32
  }
  func.func @transform_2(%arg0: i32, %arg1: i32) -> (i32, i32) {
    %c0_i32 = arith.constant 0 : i32
    %c0_i32_0 = arith.constant 0 : i32
    %c0_i32_1 = arith.constant 0 : i32
    return %c0_i32, %c0_i32_0 : i32, i32
  }
  func.func @transform_3(%arg0: i32, %arg1: i32) -> (i32, i32, i32) {
    %c0_i32 = arith.constant 0 : i32
    %c0_i32_0 = arith.constant 0 : i32
    return %arg0, %c0_i32, %arg1 : i32, i32, i32
  }
}

</mosaic_0001>

<llo_original>
// kernel: bpf_encoder_forward.1
$region0: #{bpf_encoder_forward.1}
  #allocation0 [shape = 'u32[]', space=smem, size = 0x4, offset = 0x4, fixed_abs, tag = 'smem constant byte address 0x4 - core index']
  #allocation1 [shape = 'u32[144,128]{1,0:T(1,128)}', space=vmem, size = 0x12000, scoped, tag = 'internal scratch']
  %s0 = inlined_call_operand.vmem [shape: bf16[2,16,256], index: 0, kind: input, shape index: {}]
  %s1 = inlined_call_operand.vmem [shape: bf16[24,16], index: 1, kind: input, shape index: {}]
  %s2 = inlined_call_operand.vmem [shape: f32[24,1], index: 2, kind: input, shape index: {}]
  %s3 = inlined_call_operand.hbm [shape: f32[2,8,129], index: 3, kind: output, shape index: {}]
  %s4 = sld [smem:[#allocation0]]
  $region86: #{bpf_encoder_forward.1} parent=0
    _
  %s6 = ssub.s32 1, %s4
  %s7 = scalar_select 0, %s6, %s4
  $region1: #{bpf_encoder_forward.1} parent=0
    #allocation2 [shape = 'u8[8192]{0}', space=vmem, size = 0x2000, scoped, tag = 'input window, operand 0']
    #allocation3 [shape = 'u8[8192]{0}', space=vmem, size = 0x2000, scoped, tag = 'output window, operand 0']
    #allocation4 [shape = 's32[2]{0}', space=sflag, size = 0x8, scoped, tag = 'scoped memory for bpf_encoder_forward.1']
    %8 = vsyncpa [#allocation4], 0
    %s9 = scalar_lea.sflag [#allocation4], 1
    %10 = vsyncpa %s9, 0
    loop: start=0, step=1, limit=6
    $region2: #{bpf_encoder_forward.1} parent=1 // loop_pre_header
      _
    $region3: #{bpf_encoder_forward.1} parent=1 // loop_header
      %s12 = sphi 0, %s16
      %p13 = scmp.ge.s32.totalorder %s12, 6
      %s19 = sphi 0, %s31
      %s20 = sphi 0, %s27
      %s21 = sphi 0, %s19
      %s22 = sphi 0, %s20
      %s23 = sphi 0, %s21
      %s24 = sphi 0, %s22
      %s36 = sphi 0, %s38
      %s39 = sphi 0, %s36
      %s40 = sphi 0, %s39
      %s56 = sphi 0, %s40
      %s60 = sphi 0, %s60
      %s62 = sphi 0, %s60
      %s63 = sphi 0, %s62
      %s77 = sphi 0, %s63
      %s81 = sphi 0, %s81
      %s83 = sphi 0, %s81
      %s84 = sphi 0, %s83
      %s98 = sphi 0, %s84
      %s106 = sphi 0, %s108
      %s109 = sphi 0, %s106
      %s110 = sphi 0, %s109
      %s126 = sphi 0, %s110
    $region4: #{bpf_encoder_forward.1} parent=1 // loop_header_branch
      %15 = sbr.rel (%p13) target = $region8
    $region5: #{bpf_encoder_forward.1} parent=1 // loop_body
      %s17 = ssub.s32 %s12, 1
      %s18 = ssub.s32 %s12, 2
      %s25 = sadd.s32 1, %s20
      %p26 = scmp.ge.s32.totalorder %s25, 2
      %s27 = scalar_select %p26, 0, %s25
      %s28 = sadd.s32 1, %s19
      %s29 = scalar_select %p26, %s28, %s19
      %p30 = scmp.ge.s32.totalorder %s29, 2
      %s31 = scalar_select %p30, 0, %s29
      %s32 = ssub.s32 %s19, %s31
      %s33 = ssub.s32 %s20, %s27
      %s34 = sor.u32 %s32, %s33
      %p35 = scmp.eq.s32.totalorder %s34, 0
      %s37 = sadd.s32 %s36, 1
      %s38 = scalar_select %p35, %s36, %s37
      %p41 = pneg %p35
      %p42 = scmp.eq.s32.totalorder %s12, 3
      %p43 = por %p41, %p42
      %p44 = scmp.ne.s32.totalorder %s36, %s39
      %p45 = scmp.eq.s32.totalorder %s12, 0
      %p46 = por %p44, %p45
      %p47 = scmp.ne.s32.totalorder %s36, %s39
      %p48 = scmp.eq.s32.totalorder %s17, 3
      %p49 = por %p47, %p48
      %p50 = scmp.ne.s32.totalorder %s39, %s40
      %p51 = scmp.eq.s32.totalorder %s17, 0
      %p52 = por %p50, %p51
      %p53 = scmp.ne.s32.totalorder %s39, %s40
      %p54 = scmp.eq.s32.totalorder %s18, 3
      %p55 = por %p53, %p54
      %p57 = scmp.ne.s32.totalorder %s40, %s56
      %p58 = scmp.eq.s32.totalorder %s18, 0
      %p59 = por %p57, %p58
      %s61 = sadd.s32 %s60, 1
      %p64 = scmp.eq.s32.totalorder %s12, 3
      %p65 = scmp.ne.s32.totalorder %s60, %s62
      %p66 = scmp.eq.s32.totalorder %s12, 0
      %p67 = por %p65, %p66
      %p68 = scmp.ne.s32.totalorder %s60, %s62
      %p69 = scmp.eq.s32.totalorder %s17, 3
      %p70 = por %p68, %p69
      %p71 = scmp.ne.s32.totalorder %s62, %s63
      %p72 = scmp.eq.s32.totalorder %s17, 0
      %p73 = por %p71, %p72
      %p74 = scmp.ne.s32.totalorder %s62, %s63
      %p75 = scmp.eq.s32.totalorder %s18, 3
      %p76 = por %p74, %p75
      %p78 = scmp.ne.s32.totalorder %s63, %s77
      %p79 = scmp.eq.s32.totalorder %s18, 0
      %p80 = por %p78, %p79
      %s82 = sadd.s32 %s81, 1
      %p85 = scmp.eq.s32.totalorder %s12, 3
      %p86 = scmp.ne.s32.totalorder %s81, %s83
      %p87 = scmp.eq.s32.totalorder %s12, 0
      %p88 = por %p86, %p87
      %p89 = scmp.ne.s32.totalorder %s81, %s83
      %p90 = scmp.eq.s32.totalorder %s17, 3
      %p91 = por %p89, %p90
      %p92 = scmp.ne.s32.totalorder %s83, %s84
      %p93 = scmp.eq.s32.totalorder %s17, 0
      %p94 = por %p92, %p93
      %p95 = scmp.ne.s32.totalorder %s83, %s84
      %p96 = scmp.eq.s32.totalorder %s18, 3
      %p97 = por %p95, %p96
      %p99 = scmp.ne.s32.totalorder %s84, %s98
      %p100 = scmp.eq.s32.totalorder %s18, 0
      %p101 = por %p99, %p100
      %s102 = ssub.s32 %s19, %s31
      %s103 = ssub.s32 %s20, %s27
      %s104 = sor.u32 %s102, %s103
      %p105 = scmp.eq.s32.totalorder %s104, 0
      %s107 = sadd.s32 %s106, 1
      %s108 = scalar_select %p105, %s106, %s107
      %p111 = pneg %p105
      %p112 = scmp.eq.s32.totalorder %s12, 3
      %p113 = por %p111, %p112
      %p114 = scmp.ne.s32.totalorder %s106, %s109
      %p115 = scmp.eq.s32.totalorder %s12, 0
      %p116 = por %p114, %p115
      %p117 = scmp.ne.s32.totalorder %s106, %s109
      %p118 = scmp.eq.s32.totalorder %s17, 3
      %p119 = por %p117, %p118
      %p120 = scmp.ne.s32.totalorder %s109, %s110
      %p121 = scmp.eq.s32.totalorder %s17, 0
      %p122 = por %p120, %p121
      %p123 = scmp.ne.s32.totalorder %s109, %s110
      %p124 = scmp.eq.s32.totalorder %s18, 3
      %p125 = por %p123, %p124
      %p127 = scmp.ne.s32.totalorder %s110, %s126
      %p128 = scmp.eq.s32.totalorder %s18, 0
      %p129 = por %p127, %p128
      %p130 = scmp.le.s32.totalorder 1, %s12
      %p131 = scmp.lt.s32.totalorder %s12, 5
      %p132 = pnand %p130, %p131
      %p133 = pneg %p132
      // Predicated region
      $region9: #{bpf_encoder_forward.1} parent=5 // pred_check
        _
      $region10: #{bpf_encoder_forward.1} parent=5 // pred_check_branch
        %135 = sbr.rel (%p132) target = $region12
      $region11: #{bpf_encoder_forward.1} parent=5 // pred_region
        %s136 = ssub.s32 %s12, 1
        // Predicated region
        $region13: #{bpf_encoder_forward.1} parent=11 // pred_check
          %p137 = pneg %p73
        $region14: #{bpf_encoder_forward.1} parent=11 // pred_check_branch
          %139 = sbr.rel (%p137) target = $region16
        $region15: #{bpf_encoder_forward.1} parent=11 // pred_region
          _
        $region16: #{bpf_encoder_forward.1} parent=11 // pred_fallthru
          _
        // Predicated region
        $region17: #{bpf_encoder_forward.1} parent=11 // pred_check
          %p140 = pneg %p94
        $region18: #{bpf_encoder_forward.1} parent=11 // pred_check_branch
          %142 = sbr.rel (%p140) target = $region20
        $region19: #{bpf_encoder_forward.1} parent=11 // pred_region
          _
        $region20: #{bpf_encoder_forward.1} parent=11 // pred_fallthru
          _
      $region12: #{bpf_encoder_forward.1} parent=5 // pred_fallthru
        _
      %p143 = scmp.lt.s32.totalorder %s12, 4
      // Predicated region
      $region21: #{bpf_encoder_forward.1} parent=5 // pred_check
        %p144 = pneg %p143
      $region22: #{bpf_encoder_forward.1} parent=5 // pred_check_branch
        %146 = sbr.rel (%p144) target = $region24
      $region23: #{bpf_encoder_forward.1} parent=5 // pred_region
        // Predicated region
        $region25: #{bpf_encoder_forward.1} parent=23 // pred_check
          %p147 = pneg %p46
        $region26: #{bpf_encoder_forward.1} parent=23 // pred_check_branch
          %149 = sbr.rel (%p147) target = $region28
        $region27: #{bpf_encoder_forward.1} parent=23 // pred_region
          %s150 = sand.u32 %s36, 1
          %s151 = sand.u32 %s36, 1
          %s152 = smul.addr %s151, 8
          %s153 = scalar_lea.vmem [#allocation2], %s152
          %s154 = smul.addr %s19, 4
          %s155 = sadd.s32 %s20, %s154
          %s156 = smul.addr %s155, 4
          %s157 = scalar_lea.vmem %s0, %s156
          // Predicated region
          $region29: #{bpf_encoder_forward.1} parent=27 // pred_check
            _
          $region30: #{bpf_encoder_forward.1} parent=27 // pred_check_branch
            %159 = sbr.rel (0) target = $region32
          $region31: #{bpf_encoder_forward.1} parent=27 // pred_region
            // Predicated region
            $region33: #{bpf_encoder_forward.1} parent=31 // pred_check
              _
            $region34: #{bpf_encoder_forward.1} parent=31 // pred_check_branch
              %161 = sbr.rel target = $region36
            $region35: #{bpf_encoder_forward.1} parent=31 // pred_region
              // Predicated region
              $region48: #{bpf_encoder_forward.1} parent=35 // pred_check
                _
              $region49: #{bpf_encoder_forward.1} parent=35 // pred_check_branch
                %178 = sbr.rel (0) target = $region51
              $region50: #{bpf_encoder_forward.1} parent=35 // pred_region
                loop: start=0, step=1, limit=1
                $region52: #{bpf_encoder_forward.1} parent=50 // loop_pre_header
                  _
                $region53: #{bpf_encoder_forward.1} parent=50 // loop_header
                  %s180 = sphi 0, %s184
                  %p181 = scmp.ge.s32.totalorder %s180, 1
                  %s185 = sphi %s157, %s157
                  %s186 = sphi %s153, %s153
                $region54: #{bpf_encoder_forward.1} parent=50 // loop_header_branch
                  %183 = sbr.rel (%p181) target = $region58
                $region55: #{bpf_encoder_forward.1} parent=50 // loop_body
                  _
                $region56: #{bpf_encoder_forward.1} parent=50 // loop_footer
                  %s184 = sadd.s32 1, %s180
                $region57: #{bpf_encoder_forward.1} parent=50 // loop_footer_branch
                  %179 = sbr.rel target = $region53
                $region58: #{bpf_encoder_forward.1} parent=50 // loop_exit
                  _
                loop: start=0, step=1, limit=1
                $region59: #{bpf_encoder_forward.1} parent=50 // loop_pre_header
                  _
                $region60: #{bpf_encoder_forward.1} parent=50 // loop_header
                  %s189 = sphi 0, %s193
                  %p190 = scmp.ge.s32.totalorder %s189, 1
                  %s194 = sphi %s157, %s157
                  %s195 = sphi %s153, %s153
                $region61: #{bpf_encoder_forward.1} parent=50 // loop_header_branch
                  %192 = sbr.rel (%p190) target = $region65
                $region62: #{bpf_encoder_forward.1} parent=50 // loop_body
                  %v196 = vld [vmem:[%s194] sm:$0xf]
                  %197 = vst [vmem:[%s195] sm:$0xf] %v196
                  %v198 = vld [vmem:[%s194 + $0x8] sm:$0xf]
                  %199 = vst [vmem:[%s195 + $0x4] sm:$0xf] %v198
                $region63: #{bpf_encoder_forward.1} parent=50 // loop_footer
                  %s193 = sadd.s32 1, %s189
                $region64: #{bpf_encoder_forward.1} parent=50 // loop_footer_branch
                  %188 = sbr.rel target = $region60
                $region65: #{bpf_encoder_forward.1} parent=50 // loop_exit
                  _
              $region51: #{bpf_encoder_forward.1} parent=35 // pred_fallthru
                _
            $region36: #{bpf_encoder_forward.1} parent=31 // pred_fallthru
              _
            // Predicated region
            $region37: #{bpf_encoder_forward.1} parent=31 // pred_check
              _
            $region38: #{bpf_encoder_forward.1} parent=31 // pred_check_branch
              %163 = sbr.rel (0) target = $region40
            $region39: #{bpf_encoder_forward.1} parent=31 // pred_region
              loop: start=0, step=1, limit=1
              $region41: #{bpf_encoder_forward.1} parent=39 // loop_pre_header
                _
              $region42: #{bpf_encoder_forward.1} parent=39 // loop_header
                %s166 = sphi 0, %s170
                %p167 = scmp.ge.s32.totalorder %s166, 1
                %s171 = sphi %s157, %s157
                %s172 = sphi %s153, %s153
              $region43: #{bpf_encoder_forward.1} parent=39 // loop_header_branch
                %169 = sbr.rel (%p167) target = $region47
              $region44: #{bpf_encoder_forward.1} parent=39 // loop_body
                %v173 = vld [vmem:[%s171] sm:$0xf]
                %174 = vst [vmem:[%s172] sm:$0xf] %v173
                %v175 = vld [vmem:[%s171 + $0x8] sm:$0xf]
                %176 = vst [vmem:[%s172 + $0x4] sm:$0xf] %v175
              $region45: #{bpf_encoder_forward.1} parent=39 // loop_footer
                %s170 = sadd.s32 1, %s166
              $region46: #{bpf_encoder_forward.1} parent=39 // loop_footer_branch
                %165 = sbr.rel target = $region42
              $region47: #{bpf_encoder_forward.1} parent=39 // loop_exit
                _
            $region40: #{bpf_encoder_forward.1} parent=31 // pred_fallthru
              _
          $region32: #{bpf_encoder_forward.1} parent=27 // pred_fallthru
            _
          %200 = vnop
        $region28: #{bpf_encoder_forward.1} parent=23 // pred_fallthru
          _
      $region24: #{bpf_encoder_forward.1} parent=5 // pred_fallthru
        _
      %p201 = scmp.le.s32.totalorder 1, %s12
      %p202 = scmp.lt.s32.totalorder %s12, 5
      %p203 = pnand %p201, %p202
      %p204 = pneg %p203
      // Predicated region
      $region66: #{bpf_encoder_forward.1} parent=5 // pred_check
        _
      $region67: #{bpf_encoder_forward.1} parent=5 // pred_check_branch
        %206 = sbr.rel (%p203) target = $region69
      $region68: #{bpf_encoder_forward.1} parent=5 // pred_region
        %s207 = ssub.s32 %s12, 1
        %s208 = sand.u32 %s39, 1
        %s209 = sand.u32 %s39, 1
        %s210 = smul.addr %s209, 8
        %s211 = scalar_lea.vmem [#allocation2], %s210
        // Predicated region
        $region70: #{bpf_encoder_forward.1} parent=68 // pred_check
          %p212 = pneg %p52
        $region71: #{bpf_encoder_forward.1} parent=68 // pred_check_branch
          %214 = sbr.rel (%p212) target = $region73
        $region72: #{bpf_encoder_forward.1} parent=68 // pred_region
          _
        $region73: #{bpf_encoder_forward.1} parent=68 // pred_fallthru
          _
        %s215 = sand.u32 %s39, 1
        %s216 = sand.u32 %s39, 1
        %s217 = smul.addr %s216, 8
        %s218 = scalar_lea.vmem [#allocation2], %s217
        %p219 = pneg %p52
        %p220 = pneg %p49
        %p221 = pneg %p73
        %p222 = pneg %p70
        %p223 = pneg %p94
        %p224 = pneg %p91
        %p225 = pneg %p122
        %p226 = pneg %p119
        %s227 = sand.u32 %s109, 1
        %s228 = scalar_lea.sflag [#allocation4], %s227
        %s229 = sand.u32 %s109, 1
        %s230 = smul.addr %s229, 8
        %s231 = scalar_lea.vmem [#allocation3], %s230
        %v233 = vld [vmem:[%s1] sm:$0xf]
        %v234 = vld [vmem:[%s1 + $0x4] sm:$0xf]
        %v235 = vld [vmem:[%s1 + $0x8] sm:$0xf]
        %v236 = vld [vmem:[%s211] sm:$0xf]
        %v237 = vld [vmem:[%s211 + $0x4] sm:$0xf]
        %v238 = vld [vmem:[%s2] sm:$0xff]
        %v239 = vld [vmem:[%s2 + $0x8] sm:$0xff]
        %v240 = vld [vmem:[%s2 + $0x10] sm:$0xff]
        %242 = vset.pattern.permute.xlu0 0
        %243 = vperm.xlu0 %242, %v238
        %v244 = vpop.permute.xlu0 %243
        %247 = vset.pattern.permute.xlu0 0
        %248 = vperm.xlu0 %247, %v239
        %v249 = vpop.permute.xlu0 %248
        %252 = vset.pattern.permute.xlu0 0
        %253 = vperm.xlu0 %252, %v240
        %v254 = vpop.permute.xlu0 %253
        %v259 = vunpack.c.l.b16 %v233
        %v260 = vunpack.c.l.b16 %v234
        %v261 = vunpack.c.l.b16 %v235
        %v262 = vpack.c.b16 %v260, %v259
        %v263 = vpack.c.b16 %v261, %v261
        %v266 = vunpack.c.l.b16 %v236
        %v267 = vunpack.c.l.b16 %v237
        %v268 = vpack.c.b16 %v267, %v266
        %vm270 = vcmask 130048
        %v272 = vsel %vm270, %v262, 0
        %v275 = vsel %vm270, %v263, 0
        %277 = vmatprep.subr.bf16.mxu0 0
        %278 = vmatpush1.bf16.msra.mxu0 %v268
        %279 = vmatprep.subr.bf16.mxu0 0
        %280 = vmatpush1.bf16.msra.mxu0 0
        %281 = vmatprep.subr.bf16.mxu0 0
        %282 = vmatpush1.bf16.msra.mxu0 0
        %283 = vmatprep.subr.bf16.mxu0 0
        %284 = vmatpush1.bf16.msra.mxu0 0
        %285 = vmatprep.subr.bf16.mxu0 0
        %286 = vmatpush1.bf16.msra.mxu0 0
        %287 = vmatprep.subr.bf16.mxu0 0
        %288 = vmatpush1.bf16.msra.mxu0 0
        %289 = vmatprep.subr.bf16.mxu0 0
        %290 = vmatpush1.bf16.msra.mxu0 0
        %291 = vmatprep.subr.bf16.mxu0 0
        %292 = vmatpush1.bf16.msra.mxu0 0
        %293 = vmatprep.subr.bf16.mxu0 0
        %294 = vmatpush1.bf16.msra.mxu0 0
        %295 = vmatprep.subr.bf16.mxu0 0
        %296 = vmatpush1.bf16.msra.mxu0 0
        %297 = vmatprep.subr.bf16.mxu0 0
        %298 = vmatpush1.bf16.msra.mxu0 0
        %299 = vmatprep.subr.bf16.mxu0 0
        %300 = vmatpush1.bf16.msra.mxu0 0
        %301 = vmatprep.subr.bf16.mxu0 0
        %302 = vmatpush1.bf16.msra.mxu0 0
        %303 = vmatprep.subr.bf16.mxu0 0
        %304 = vmatpush1.bf16.msra.mxu0 0
        %305 = vmatprep.subr.bf16.mxu0 0
        %306 = vmatpush1.bf16.msra.mxu0 0
        %307 = vmatprep.subr.bf16.mxu0 0
        %308 = vmatpush1.bf16.msra.mxu0 0
        %309 = vmatprep.mubr.bf16.mxu0 0
        %310 = vmatmul.mubr.bf16.gmra.mrb[0].mxu0 %v272
        %v311 = vpop.f32.mrb[0].mxu0
        %v312 = vadd.f32 %v244, %v311
        %v313 = vpop.f32.mrb[0].mxu0
        %v314 = vpop.f32.mrb[0].mxu0
        %v315 = vadd.f32 %v249, %v314
        %v316 = vpop.f32.mrb[0].mxu0
        %317 = vmatprep.mubr.bf16.mxu0 0
        %318 = vmatmul.mubr.bf16.gmra.mrb[0].mxu0 %v275
        %v319 = vpop.f32.mrb[0].mxu0
        %v320 = vadd.f32 %v254, %v319
        %v321 = vpop.f32.mrb[0].mxu0
        %v322 = vpop.f32.mrb[0].mxu0
        %v323 = vpop.f32.mrb[0].mxu0
        %324 = vdwg.mxu0
        %v325 = vxor.u32 %v320, 2147483648
        %v326 = vmul.f32 %v325, 1.442695
        %v327 = vpow.pop %v326
        %v328 = vadd.f32 %v327, 1.0
        %v329 = vrcp.pop %v328
        %v330 = vmul.f32 1.0, %v329
        %v331 = vsub.f32 %v312, %v315
        %v332 = vmul.f32 %v330, %v331
        %v333 = vadd.f32 %v315, %v332
        %334 = vst [vmem:[%s231] sm:$0xff] %v333
        %s335 = sand.u32 %s109, 1
        %s336 = scalar_lea.sflag [#allocation4], %s335
        %s337 = sand.u32 %s109, 1
        %s338 = smul.addr %s337, 8
        %s339 = scalar_lea.vmem [#allocation3], %s338
        // Predicated region
        $region74: #{bpf_encoder_forward.1} parent=68 // pred_check
          %p340 = pneg %p119
        $region75: #{bpf_encoder_forward.1} parent=68 // pred_check_branch
          %342 = sbr.rel (%p340) target = $region77
        $region76: #{bpf_encoder_forward.1} parent=68 // pred_region
          %s344 = ssub.s32 128, 128
          %345 = vsyncadd %s336, %s344
          %s346 = smul.addr %s21, 2
          %s347 = sadd.s32 %s22, %s346
          %s348 = smul.addr %s347, 128
          %s349 = scalar_lea.hbm %s3, %s348
          %s351 = sshll.u32 %s339, 4
          %s352 = int_to_ptr.vmem [resolvable:$true] %s351
          %354 = dma.vmem_to_hbm [thread:$0]  %s352, 128, %s349, %s336
        $region77: #{bpf_encoder_forward.1} parent=68 // pred_fallthru
          _
      $region69: #{bpf_encoder_forward.1} parent=5 // pred_fallthru
        _
      %p355 = scmp.le.s32.totalorder 2, %s12
      // Predicated region
      $region78: #{bpf_encoder_forward.1} parent=5 // pred_check
        %p356 = pneg %p355
      $region79: #{bpf_encoder_forward.1} parent=5 // pred_check_branch
        %358 = sbr.rel (%p356) target = $region81
      $region80: #{bpf_encoder_forward.1} parent=5 // pred_region
        %s359 = ssub.s32 %s12, 2
        // Predicated region
        $region82: #{bpf_encoder_forward.1} parent=80 // pred_check
          %p360 = pneg %p125
        $region83: #{bpf_encoder_forward.1} parent=80 // pred_check_branch
          %362 = sbr.rel (%p360) target = $region85
        $region84: #{bpf_encoder_forward.1} parent=80 // pred_region
          %s363 = sand.u32 %s110, 1
          %s364 = scalar_lea.sflag [#allocation4], %s363
          %s365 = sand.u32 %s110, 1
          %s366 = smul.addr %s365, 8
          %s367 = scalar_lea.vmem [#allocation3], %s366
          %368 = dma.done %s364, 128
        $region85: #{bpf_encoder_forward.1} parent=80 // pred_fallthru
          _
      $region81: #{bpf_encoder_forward.1} parent=5 // pred_fallthru
        _
    $region6: #{bpf_encoder_forward.1} parent=1 // loop_footer
      %s16 = sadd.s32 1, %s12
    $region7: #{bpf_encoder_forward.1} parent=1 // loop_footer_branch
      %11 = sbr.rel target = $region3
    $region8: #{bpf_encoder_forward.1} parent=1 // loop_exit
      _
    %369 = vsyncpa [#allocation4], 1
    %s370 = scalar_lea.sflag [#allocation4], 1
    %371 = vsyncpa %s370, 1

</llo_original>
